<compile_context>
chip_gen: v5e
topology: v5e:2x2
jax: 0.10.0
libtpu: 0.0.40
codegen_flags: <defaults>
</compile_context>

<pallas_src>
import numpy as np
import jax
import jax.numpy as jnp
from jax.experimental import pallas as pl
from jax.experimental.pallas import tpu as pltpu

EPS = 1e-08


# ----------------------------------------------------------------------------
# Fused kernel: candidate hard-negative distances + triplet hinge + cosine sims
# Inputs are [tb, D] blocks (batch on sublanes); outputs are [tb, 1] per-row.
# ----------------------------------------------------------------------------
def _fused_loss_kernel(margin_ref, img_ref, txt_ref, tc0_ref, tc1_ref,
                       ic0_ref, ic1_ref, sims_ref, i2t_ref, t2i_ref):
    margin = margin_ref[0]        # SMEM scalar (no recompile when margin changes)
    img = img_ref[...]            # [tb, D]   image embeddings (anchor/positive)
    txt = txt_ref[...]            # [tb, D]   text embeddings  (anchor/positive)
    tc0 = tc0_ref[...]            # [tb, D]   text negative candidate 0
    tc1 = tc1_ref[...]            # [tb, D]   text negative candidate 1
    ic0 = ic0_ref[...]            # [tb, D]   image negative candidate 0
    ic1 = ic1_ref[...]            # [tb, D]   image negative candidate 1

    def rowdot(x, y):
        # per-sample dot product over the feature (lane) axis -> [tb, 1]
        return jnp.sum(x * y, axis=-1, keepdims=True)

    # Sum-of-squares: each computed exactly once and reused.
    ss_img = rowdot(img, img)
    ss_txt = rowdot(txt, txt)
    ss_tc0 = rowdot(tc0, tc0)
    ss_tc1 = rowdot(tc1, tc1)
    ss_ic0 = rowdot(ic0, ic0)
    ss_ic1 = rowdot(ic1, ic1)

    # Pair dot products.
    w_pos = rowdot(img, txt)
    w_tc0 = rowdot(img, tc0)
    w_tc1 = rowdot(img, tc1)
    w_ic0 = rowdot(txt, ic0)
    w_ic1 = rowdot(txt, ic1)

    def inv_norm_clamped(ss1, ss2):
        # 1 / clamp(|x1|*|x2|, EPS) == rsqrt(max(ss1*ss2, EPS^2))   (EUP rsqrt)
        return jax.lax.rsqrt(jnp.maximum(ss1 * ss2, EPS * EPS))

    # Positive cosine distance / similarity (shared by i2t and t2i: symmetric).
    pos_dist = 1.0 - w_pos * inv_norm_clamped(ss_img, ss_txt)
    # Reference `cosine_distance` returns an UNclamped similarity; keep that.
    sims = w_pos * jax.lax.rsqrt(ss_img * ss_txt)

    # Hard-negative distance = the closer of the 2 sampled candidates
    # (the reference recomputes cosine_distance(anchor, selected_negative),
    #  which equals the selected candidate distance, so min() suffices).
    neg_i2t = jnp.minimum(1.0 - w_tc0 * inv_norm_clamped(ss_img, ss_tc0),
                          1.0 - w_tc1 * inv_norm_clamped(ss_img, ss_tc1))
    neg_t2i = jnp.minimum(1.0 - w_ic0 * inv_norm_clamped(ss_txt, ss_ic0),
                          1.0 - w_ic1 * inv_norm_clamped(ss_txt, ss_ic1))

    # mode == 'local':  relu(pos_dist - neg_dist + margin), per row.
    sims_ref[...] = sims
    i2t_ref[...] = jnp.maximum(pos_dist - neg_i2t + margin, 0.0)
    t2i_ref[...] = jnp.maximum(pos_dist - neg_t2i + margin, 0.0)


# ----------------------------------------------------------------------------
# Tile selection (per-chip) and pallas_call wrapper
# ----------------------------------------------------------------------------
def _round_up(x, m):
    return (x + m - 1) // m * m


def _vmem_budget_bytes():
    # Derive the VMEM budget from the actual chip (64 MiB on v7x, 128 MiB on
    # v5e/v6e); leave 25% headroom for outputs / compiler scratch.
    try:
        cap = int(pltpu.get_tpu_info().vmem_capacity_bytes)
    except Exception:
        cap = 64 << 20  # conservative fallback (v7x per-TC physical VMEM)
    return int(cap * 0.75)


def _choose_batch_tile(B, D, budget_bytes):
    # Double-buffered input footprint: 2 bufs x 6 inputs x tb x D x 4 bytes.
    tb_cap = budget_bytes // (48 * D)
    tb_cap = max(8, (tb_cap // 8) * 8)
    tb_cap = min(tb_cap, 1024)           # mem-bound roofline saturates ~512-1024
    B8 = _round_up(B, 8)
    if B8 <= tb_cap:
        if B8 >= 512:
            # keep >= 2 grid blocks so both v7x TensorCores get work
            return min(_round_up((B8 + 1) // 2, 8), tb_cap)
        return B8                        # tiny batch: one block, no padding blowup
    return tb_cap


def _fused_forward(img, txt, tc0, tc1, ic0, ic1, margin, B, tb, vmem_limit):
    B_pad, D = img.shape
    nb = B_pad // tb

    in_spec = pl.BlockSpec((tb, D), lambda i: (i, 0))
    out_spec = pl.BlockSpec((tb, 1), lambda i: (i, 0))
    smem_spec = pl.BlockSpec(memory_space=pltpu.MemorySpace.SMEM)

    sims, i2t_l, t2i_l = pl.pallas_call(
        _fused_loss_kernel,
        out_shape=(jax.ShapeDtypeStruct((B_pad, 1), jnp.float32),
                   jax.ShapeDtypeStruct((B_pad, 1), jnp.float32),
                   jax.ShapeDtypeStruct((B_pad, 1), jnp.float32)),
        grid=(nb,),
        in_specs=[smem_spec] + [in_spec] * 6,
        out_specs=(out_spec, out_spec, out_spec),
        compiler_params=pltpu.CompilerParams(
            dimension_semantics=("parallel",),   # batch blocks -> both TCs on v7x
            vmem_limit_bytes=vmem_limit),        # v5e default 16 MiB not binding
    )(jnp.full((1,), margin, jnp.float32), img, txt, tc0, tc1, ic0, ic1)

    # Final fold (2*B floats) kept outside the kernel so the batch axis stays
    # "parallel"; padded rows are sliced out so they never bias the loss.
    loss = jnp.sum(i2t_l[:B, 0]) / B + jnp.sum(t2i_l[:B, 0]) / B
    return loss, sims[:B, 0]


# ----------------------------------------------------------------------------
# Host-side candidate drawing (data-independent randomness, as in the reference)
# ----------------------------------------------------------------------------
def _draw_candidate_ids(batch_size, np_seed):
    """2 random candidate ids != i per row, drawn in the reference's call order:
    first the image-negative sampler (candidates = image embeddings), then the
    text-negative sampler (candidates = text embeddings)."""
    ids = np.arange(batch_size)
    rng = np.random.default_rng(np_seed)   # deterministic stand-in for np.random
    img_cand = np.stack([rng.choice(ids[ids != i], size=2, replace=False)
                         for i in range(batch_size)]).astype(np.int32)
    txt_cand = np.stack([rng.choice(ids[ids != i], size=2, replace=False)
                         for i in range(batch_size)]).astype(np.int32)
    return img_cand, txt_cand


def contrastive_loss_cosine2_forward(img_embedding, text_embedding, labels,
                                     locations, margin, mode, np_seed=0):
    del labels      # reference immediately overwrites `labels` with arange(batch)
    del locations   # only needed by the (undefined-weights) 'global' path
    assert mode == "local", "only 'local' mode is implemented (see TODO(synk))"

    img = jnp.asarray(img_embedding, jnp.float32)   # [B, D], native row-major
    txt = jnp.asarray(text_embedding, jnp.float32)
    B, D = img.shape

    img_cand_ids, txt_cand_ids = _draw_candidate_ids(B, np_seed)

    # Gather ONLY the 2 sampled candidate rows per sample, as contiguous ROW
    # gathers on the native [B, D] arrays (O(B*D), DMA-friendly, no transposes,
    # no BxB distance matrix, no device->host round trip).
    tc0 = txt[txt_cand_ids[:, 0]]   # text-negative candidates (vs image anchor)
    tc1 = txt[txt_cand_ids[:, 1]]
    ic0 = img[img_cand_ids[:, 0]]   # image-negative candidates (vs text anchor)
    ic1 = img[img_cand_ids[:, 1]]

    vmem_limit = _vmem_budget_bytes()
    tb = _choose_batch_tile(B, D, vmem_limit)
    B_pad = _round_up(B, tb)
    if B_pad != B:
        pad = ((0, B_pad - B), (0, 0))
        img, txt, tc0, tc1, ic0, ic1 = [
            jnp.pad(a, pad, constant_values=1.0)   # non-zero rows: no NaN noise
            for a in (img, txt, tc0, tc1, ic0, ic1)]

    loss, sims = _fused_forward(img, txt, tc0, tc1, ic0, ic1, margin,
                                B, tb, vmem_limit)
    # i2t_cosine and t2i_cosine are mathematically identical (cosine is symmetric);
    # the reference computes the same values twice.
    return loss, sims, sims


# ----------------------------------------------------------------------------
# main
# ----------------------------------------------------------------------------
if __name__ == "__main__":
    B, D = 8, 32
    key = jax.random.PRNGKey(0)
    k1, k2, k3 = jax.random.split(key, 3)
    img = jax.random.normal(k1, (B, D), dtype=jnp.float32)
    txt = jax.random.normal(k2, (B, D), dtype=jnp.float32)
    labels = jnp.arange(B, dtype=jnp.int32)
    locations = jax.random.normal(k3, (B,), dtype=jnp.float32)
    margin = 0.2

    loss, i2t_cos, t2i_cos = contrastive_loss_cosine2_forward(
        img, txt, labels, locations, margin=margin, mode="local", np_seed=0)
    jax.block_until_ready((loss, i2t_cos, t2i_cos))

    # numpy cross-check of the kernel math
    xi, xt = np.asarray(img), np.asarray(txt)

    def np_cos(a, b):
        w12 = (a * b).sum(-1)
        n = np.linalg.norm(a, axis=-1) * np.linalg.norm(b, axis=-1)
        return 1.0 - w12 / np.maximum(n, EPS), w12 / n

    img_cand_ids, txt_cand_ids = _draw_candidate_ids(B, 0)
    pos_d, ref_sim = np_cos(xi, xt)
    neg_i2t = np.minimum(np_cos(xi, xt[txt_cand_ids[:, 0]])[0],
                         np_cos(xi, xt[txt_cand_ids[:, 1]])[0])
    neg_t2i = np.minimum(np_cos(xt, xi[img_cand_ids[:, 0]])[0],
                         np_cos(xt, xi[img_cand_ids[:, 1]])[0])
    ref_loss = (np.maximum(pos_d - neg_i2t + margin, 0.0).mean()
                + np.maximum(pos_d - neg_t2i + margin, 0.0).mean())

    assert np.asarray(loss).shape == ()
    assert np.allclose(np.asarray(i2t_cos), ref_sim, atol=1e-4)
    assert np.allclose(np.asarray(t2i_cos), ref_sim, atol=1e-4)
    assert np.allclose(float(loss), ref_loss, atol=1e-4)

    print("KERNEL_OK")
</pallas_src>

<mosaic_0001>
module attributes {stable_mosaic.version = 11 : i64} {
  func.func @_fused_loss_kernel(%arg0: i32, %arg1: memref<1xf32, #tpu.memory_space<smem>>, %arg2: memref<8x32xf32, #tpu.memory_space<vmem>>, %arg3: memref<8x32xf32, #tpu.memory_space<vmem>>, %arg4: memref<8x32xf32, #tpu.memory_space<vmem>>, %arg5: memref<8x32xf32, #tpu.memory_space<vmem>>, %arg6: memref<8x32xf32, #tpu.memory_space<vmem>>, %arg7: memref<8x32xf32, #tpu.memory_space<vmem>>, %arg8: memref<8x1xf32, #tpu.memory_space<vmem>>, %arg9: memref<8x1xf32, #tpu.memory_space<vmem>>, %arg10: memref<8x1xf32, #tpu.memory_space<vmem>>) attributes {dimension_semantics = [#tpu.dimension_semantics<parallel>], iteration_bounds = array<i64: 1>, scalar_prefetch = 0 : i64, scratch_operands = 0 : i64, tpu.core_type = #tpu.core_type<tc>, window_params = [{transform_indices = @transform_0, window_bounds = array<i64: 1>}, {transform_indices = @transform_1, window_bounds = array<i64: 8, 32>}, {transform_indices = @transform_2, window_bounds = array<i64: 8, 32>}, {transform_indices = @transform_3, window_bounds = array<i64: 8, 32>}, {transform_indices = @transform_4, window_bounds = array<i64: 8, 32>}, {transform_indices = @transform_5, window_bounds = array<i64: 8, 32>}, {transform_indices = @transform_6, window_bounds = array<i64: 8, 32>}, {transform_indices = @transform_7, window_bounds = array<i64: 8, 1>}, {transform_indices = @transform_8, window_bounds = array<i64: 8, 1>}, {transform_indices = @transform_9, window_bounds = array<i64: 8, 1>}]} {
    %c0 = arith.constant 0 : index
    %0 = memref.load %arg1[%c0] : memref<1xf32, #tpu.memory_space<smem>>
    %c0_0 = arith.constant 0 : index
    %c0_1 = arith.constant 0 : index
    %1 = vector.load %arg2[%c0_0, %c0_1] : memref<8x32xf32, #tpu.memory_space<vmem>>, vector<8x32xf32>
    %c0_2 = arith.constant 0 : index
    %c0_3 = arith.constant 0 : index
    %2 = vector.load %arg3[%c0_2, %c0_3] : memref<8x32xf32, #tpu.memory_space<vmem>>, vector<8x32xf32>
    %c0_4 = arith.constant 0 : index
    %c0_5 = arith.constant 0 : index
    %3 = vector.load %arg4[%c0_4, %c0_5] : memref<8x32xf32, #tpu.memory_space<vmem>>, vector<8x32xf32>
    %c0_6 = arith.constant 0 : index
    %c0_7 = arith.constant 0 : index
    %4 = vector.load %arg5[%c0_6, %c0_7] : memref<8x32xf32, #tpu.memory_space<vmem>>, vector<8x32xf32>
    %c0_8 = arith.constant 0 : index
    %c0_9 = arith.constant 0 : index
    %5 = vector.load %arg6[%c0_8, %c0_9] : memref<8x32xf32, #tpu.memory_space<vmem>>, vector<8x32xf32>
    %c0_10 = arith.constant 0 : index
    %c0_11 = arith.constant 0 : index
    %6 = vector.load %arg7[%c0_10, %c0_11] : memref<8x32xf32, #tpu.memory_space<vmem>>, vector<8x32xf32>
    %7 = arith.mulf %1, %1 : vector<8x32xf32>
    %cst = arith.constant dense<0.000000e+00> : vector<8xf32>
    %8 = vector.multi_reduction <add>, %7, %cst [1] : vector<8x32xf32> to vector<8xf32>
    %9 = vector.shape_cast %8 : vector<8xf32> to vector<8x1xf32>
    %10 = arith.mulf %2, %2 : vector<8x32xf32>
    %cst_12 = arith.constant dense<0.000000e+00> : vector<8xf32>
    %11 = vector.multi_reduction <add>, %10, %cst_12 [1] : vector<8x32xf32> to vector<8xf32>
    %12 = vector.shape_cast %11 : vector<8xf32> to vector<8x1xf32>
    %13 = arith.mulf %3, %3 : vector<8x32xf32>
    %cst_13 = arith.constant dense<0.000000e+00> : vector<8xf32>
    %14 = vector.multi_reduction <add>, %13, %cst_13 [1] : vector<8x32xf32> to vector<8xf32>
    %15 = vector.shape_cast %14 : vector<8xf32> to vector<8x1xf32>
    %16 = arith.mulf %4, %4 : vector<8x32xf32>
    %cst_14 = arith.constant dense<0.000000e+00> : vector<8xf32>
    %17 = vector.multi_reduction <add>, %16, %cst_14 [1] : vector<8x32xf32> to vector<8xf32>
    %18 = vector.shape_cast %17 : vector<8xf32> to vector<8x1xf32>
    %19 = arith.mulf %5, %5 : vector<8x32xf32>
    %cst_15 = arith.constant dense<0.000000e+00> : vector<8xf32>
    %20 = vector.multi_reduction <add>, %19, %cst_15 [1] : vector<8x32xf32> to vector<8xf32>
    %21 = vector.shape_cast %20 : vector<8xf32> to vector<8x1xf32>
    %22 = arith.mulf %6, %6 : vector<8x32xf32>
    %cst_16 = arith.constant dense<0.000000e+00> : vector<8xf32>
    %23 = vector.multi_reduction <add>, %22, %cst_16 [1] : vector<8x32xf32> to vector<8xf32>
    %24 = vector.shape_cast %23 : vector<8xf32> to vector<8x1xf32>
    %25 = arith.mulf %1, %2 : vector<8x32xf32>
    %cst_17 = arith.constant dense<0.000000e+00> : vector<8xf32>
    %26 = vector.multi_reduction <add>, %25, %cst_17 [1] : vector<8x32xf32> to vector<8xf32>
    %27 = vector.shape_cast %26 : vector<8xf32> to vector<8x1xf32>
    %28 = arith.mulf %1, %3 : vector<8x32xf32>
    %cst_18 = arith.constant dense<0.000000e+00> : vector<8xf32>
    %29 = vector.multi_reduction <add>, %28, %cst_18 [1] : vector<8x32xf32> to vector<8xf32>
    %30 = vector.shape_cast %29 : vector<8xf32> to vector<8x1xf32>
    %31 = arith.mulf %1, %4 : vector<8x32xf32>
    %cst_19 = arith.constant dense<0.000000e+00> : vector<8xf32>
    %32 = vector.multi_reduction <add>, %31, %cst_19 [1] : vector<8x32xf32> to vector<8xf32>
    %33 = vector.shape_cast %32 : vector<8xf32> to vector<8x1xf32>
    %34 = arith.mulf %2, %5 : vector<8x32xf32>
    %cst_20 = arith.constant dense<0.000000e+00> : vector<8xf32>
    %35 = vector.multi_reduction <add>, %34, %cst_20 [1] : vector<8x32xf32> to vector<8xf32>
    %36 = vector.shape_cast %35 : vector<8xf32> to vector<8x1xf32>
    %37 = arith.mulf %2, %6 : vector<8x32xf32>
    %cst_21 = arith.constant dense<0.000000e+00> : vector<8xf32>
    %38 = vector.multi_reduction <add>, %37, %cst_21 [1] : vector<8x32xf32> to vector<8xf32>
    %39 = vector.shape_cast %38 : vector<8xf32> to vector<8x1xf32>
    %40 = arith.mulf %9, %12 : vector<8x1xf32>
    %cst_22 = arith.constant 1.000000e-16 : f32
    %41 = vector.broadcast %cst_22 : f32 to vector<8x1xf32>
    %42 = arith.maximumf %40, %41 : vector<8x1xf32>
    %43 = math.rsqrt %42 : vector<8x1xf32>
    %44 = arith.mulf %27, %43 : vector<8x1xf32>
    %cst_23 = arith.constant 1.000000e+00 : f32
    %45 = vector.broadcast %cst_23 : f32 to vector<8x1xf32>
    %46 = arith.subf %45, %44 : vector<8x1xf32>
    %47 = arith.mulf %9, %12 : vector<8x1xf32>
    %48 = math.rsqrt %47 : vector<8x1xf32>
    %49 = arith.mulf %27, %48 : vector<8x1xf32>
    %50 = arith.mulf %9, %15 : vector<8x1xf32>
    %cst_24 = arith.constant 1.000000e-16 : f32
    %51 = vector.broadcast %cst_24 : f32 to vector<8x1xf32>
    %52 = arith.maximumf %50, %51 : vector<8x1xf32>
    %53 = math.rsqrt %52 : vector<8x1xf32>
    %54 = arith.mulf %30, %53 : vector<8x1xf32>
    %cst_25 = arith.constant 1.000000e+00 : f32
    %55 = vector.broadcast %cst_25 : f32 to vector<8x1xf32>
    %56 = arith.subf %55, %54 : vector<8x1xf32>
    %57 = arith.mulf %9, %18 : vector<8x1xf32>
    %cst_26 = arith.constant 1.000000e-16 : f32
    %58 = vector.broadcast %cst_26 : f32 to vector<8x1xf32>
    %59 = arith.maximumf %57, %58 : vector<8x1xf32>
    %60 = math.rsqrt %59 : vector<8x1xf32>
    %61 = arith.mulf %33, %60 : vector<8x1xf32>
    %cst_27 = arith.constant 1.000000e+00 : f32
    %62 = vector.broadcast %cst_27 : f32 to vector<8x1xf32>
    %63 = arith.subf %62, %61 : vector<8x1xf32>
    %64 = arith.minimumf %56, %63 : vector<8x1xf32>
    %65 = arith.mulf %12, %21 : vector<8x1xf32>
    %cst_28 = arith.constant 1.000000e-16 : f32
    %66 = vector.broadcast %cst_28 : f32 to vector<8x1xf32>
    %67 = arith.maximumf %65, %66 : vector<8x1xf32>
    %68 = math.rsqrt %67 : vector<8x1xf32>
    %69 = arith.mulf %36, %68 : vector<8x1xf32>
    %cst_29 = arith.constant 1.000000e+00 : f32
    %70 = vector.broadcast %cst_29 : f32 to vector<8x1xf32>
    %71 = arith.subf %70, %69 : vector<8x1xf32>
    %72 = arith.mulf %12, %24 : vector<8x1xf32>
    %cst_30 = arith.constant 1.000000e-16 : f32
    %73 = vector.broadcast %cst_30 : f32 to vector<8x1xf32>
    %74 = arith.maximumf %72, %73 : vector<8x1xf32>
    %75 = math.rsqrt %74 : vector<8x1xf32>
    %76 = arith.mulf %39, %75 : vector<8x1xf32>
    %cst_31 = arith.constant 1.000000e+00 : f32
    %77 = vector.broadcast %cst_31 : f32 to vector<8x1xf32>
    %78 = arith.subf %77, %76 : vector<8x1xf32>
    %79 = arith.minimumf %71, %78 : vector<8x1xf32>
    %c0_32 = arith.constant 0 : index
    %c0_33 = arith.constant 0 : index
    %80 = vector.load %arg8[%c0_32, %c0_33] : memref<8x1xf32, #tpu.memory_space<vmem>>, vector<8x1xf32>
    tpu.vector_store %arg8[%c0_32, %c0_33], %49 {strides = array<i32>} : memref<8x1xf32, #tpu.memory_space<vmem>>, vector<8x1xf32>,
    %81 = arith.subf %46, %64 : vector<8x1xf32>
    %82 = vector.broadcast %0 : f32 to vector<8x1xf32>
    %83 = arith.addf %81, %82 : vector<8x1xf32>
    %cst_34 = arith.constant 0.000000e+00 : f32
    %84 = vector.broadcast %cst_34 : f32 to vector<8x1xf32>
    %85 = arith.maximumf %83, %84 : vector<8x1xf32>
    %c0_35 = arith.constant 0 : index
    %c0_36 = arith.constant 0 : index
    %86 = vector.load %arg9[%c0_35, %c0_36] : memref<8x1xf32, #tpu.memory_space<vmem>>, vector<8x1xf32>
    tpu.vector_store %arg9[%c0_35, %c0_36], %85 {strides = array<i32>} : memref<8x1xf32, #tpu.memory_space<vmem>>, vector<8x1xf32>,
    %87 = arith.subf %46, %79 : vector<8x1xf32>
    %88 = vector.broadcast %0 : f32 to vector<8x1xf32>
    %89 = arith.addf %87, %88 : vector<8x1xf32>
    %cst_37 = arith.constant 0.000000e+00 : f32
    %90 = vector.broadcast %cst_37 : f32 to vector<8x1xf32>
    %91 = arith.maximumf %89, %90 : vector<8x1xf32>
    %c0_38 = arith.constant 0 : index
    %c0_39 = arith.constant 0 : index
    %92 = vector.load %arg10[%c0_38, %c0_39] : memref<8x1xf32, #tpu.memory_space<vmem>>, vector<8x1xf32>
    tpu.vector_store %arg10[%c0_38, %c0_39], %91 {strides = array<i32>} : memref<8x1xf32, #tpu.memory_space<vmem>>, vector<8x1xf32>,
    return
  }
  func.func @transform_0(%arg0: i32) -> i32 {
    %c0_i32 = arith.constant 0 : i32
    %c0_i32_0 = arith.constant 0 : i32
    return %c0_i32 : i32
  }
  func.func @transform_1(%arg0: i32) -> (i32, i32) {
    %c0_i32 = arith.constant 0 : i32
    %c0_i32_0 = arith.constant 0 : i32
    return %arg0, %c0_i32 : i32, i32
  }
  func.func @transform_2(%arg0: i32) -> (i32, i32) {
    %c0_i32 = arith.constant 0 : i32
    %c0_i32_0 = arith.constant 0 : i32
    return %arg0, %c0_i32 : i32, i32
  }
  func.func @transform_3(%arg0: i32) -> (i32, i32) {
    %c0_i32 = arith.constant 0 : i32
    %c0_i32_0 = arith.constant 0 : i32
    return %arg0, %c0_i32 : i32, i32
  }
  func.func @transform_4(%arg0: i32) -> (i32, i32) {
    %c0_i32 = arith.constant 0 : i32
    %c0_i32_0 = arith.constant 0 : i32
    return %arg0, %c0_i32 : i32, i32
  }
  func.func @transform_5(%arg0: i32) -> (i32, i32) {
    %c0_i32 = arith.constant 0 : i32
    %c0_i32_0 = arith.constant 0 : i32
    return %arg0, %c0_i32 : i32, i32
  }
  func.func @transform_6(%arg0: i32) -> (i32, i32) {
    %c0_i32 = arith.constant 0 : i32
    %c0_i32_0 = arith.constant 0 : i32
    return %arg0, %c0_i32 : i32, i32
  }
  func.func @transform_7(%arg0: i32) -> (i32, i32) {
    %c0_i32 = arith.constant 0 : i32
    %c0_i32_0 = arith.constant 0 : i32
    return %arg0, %c0_i32 : i32, i32
  }
  func.func @transform_8(%arg0: i32) -> (i32, i32) {
    %c0_i32 = arith.constant 0 : i32
    %c0_i32_0 = arith.constant 0 : i32
    return %arg0, %c0_i32 : i32, i32
  }
  func.func @transform_9(%arg0: i32) -> (i32, i32) {
    %c0_i32 = arith.constant 0 : i32
    %c0_i32_0 = arith.constant 0 : i32
    return %arg0, %c0_i32 : i32, i32
  }
}

</mosaic_0001>

<llo_original>
// kernel: tpu_custom_call.1
$region0: #{tpu_custom_call.1}
  #allocation0 [shape = 'u32[]', space=smem, size = 0x4, offset = 0x4, fixed_abs, tag = 'smem constant byte address 0x4 - core index']
  #allocation1 [shape = 'u32[72,128]{1,0:T(1,128)}', space=vmem, size = 0x9000, scoped, tag = 'internal scratch']
  #allocation2 [shape = 'f32[1]{0:T(128)S(6)}', space=smem, size = 0x200, scoped, tag = 'scoped memory for tpu_custom_call.1']
  %s0 = inlined_call_operand.<no memory space> [shape: f32[1], index: 0, kind: input, shape index: {}]
  %s1 = inlined_call_operand.hbm [shape: f32[8,32], index: 1, kind: input, shape index: {}]
  %s2 = inlined_call_operand.hbm [shape: f32[8,32], index: 2, kind: input, shape index: {}]
  %s3 = inlined_call_operand.hbm [shape: f32[8,32], index: 3, kind: input, shape index: {}]
  %s4 = inlined_call_operand.hbm [shape: f32[8,32], index: 4, kind: input, shape index: {}]
  %s5 = inlined_call_operand.hbm [shape: f32[8,32], index: 5, kind: input, shape index: {}]
  %s6 = inlined_call_operand.hbm [shape: f32[8,32], index: 6, kind: input, shape index: {}]
  %s7 = inlined_call_operand.vmem [shape: f32[8,1], index: 7, kind: output, shape index: {0}]
  %s8 = inlined_call_operand.vmem [shape: f32[8,1], index: 8, kind: output, shape index: {1}]
  %s9 = inlined_call_operand.vmem [shape: f32[8,1], index: 9, kind: output, shape index: {2}]
  %10 = xla_tuple %s7, %s8, %s9
  %s11 = sld [smem:[#allocation0]]
  $region78: #{tpu_custom_call.1} parent=0
    _
  %s13 = ssub.s32 1, %s11
  %s14 = scalar_select 0, %s13, %s11
  %15 = sst [smem:[#allocation2]] %s0
  $region1: #{tpu_custom_call.1} parent=0
    #allocation3 [shape = 'u8[4096]{0}', space=vmem, size = 0x1000, scoped, tag = 'input window, operand 1, single buffered']
    #allocation4 [shape = 's32[1]{0}', space=sflag, size = 0x4, scoped, tag = 'scoped memory for tpu_custom_call.1']
    #allocation5 [shape = 'u8[4096]{0}', space=vmem, size = 0x1000, scoped, tag = 'input window, operand 2, single buffered']
    #allocation6 [shape = 's32[1]{0}', space=sflag, size = 0x4, scoped, tag = 'scoped memory for tpu_custom_call.1']
    #allocation7 [shape = 'u8[4096]{0}', space=vmem, size = 0x1000, scoped, tag = 'input window, operand 3, single buffered']
    #allocation8 [shape = 'u8[4096]{0}', space=vmem, size = 0x1000, scoped, tag = 'input window, operand 4, single buffered']
    #allocation9 [shape = 's32[1]{0}', space=sflag, size = 0x4, scoped, tag = 'scoped memory for tpu_custom_call.1']
    #allocation10 [shape = 'u8[4096]{0}', space=vmem, size = 0x1000, scoped, tag = 'input window, operand 5, single buffered']
    #allocation11 [shape = 'u8[4096]{0}', space=vmem, size = 0x1000, scoped, tag = 'input window, operand 6, single buffered']
    #allocation12 [shape = 's32[1]{0}', space=sflag, size = 0x4, scoped, tag = 'scoped memory for tpu_custom_call.1']
    %16 = vsyncpa [#allocation4], 0
    %17 = vsyncpa [#allocation6], 0
    %18 = vsyncpa [#allocation9], 0
    %19 = vsyncpa [#allocation12], 0
    // Predicated region
    $region2: #{tpu_custom_call.1} parent=1 // pred_check
      _
    $region3: #{tpu_custom_call.1} parent=1 // pred_check_branch
      %21 = sbr.rel (0) target = $region5
    $region4: #{tpu_custom_call.1} parent=1 // pred_region
      _
    $region5: #{tpu_custom_call.1} parent=1 // pred_fallthru
      _
    // Predicated region
    $region6: #{tpu_custom_call.1} parent=1 // pred_check
      _
    $region7: #{tpu_custom_call.1} parent=1 // pred_check_branch
      %23 = sbr.rel (0) target = $region9
    $region8: #{tpu_custom_call.1} parent=1 // pred_region
      %25 = vsyncadd [#allocation4], 0
      %s27 = sshll.u32 %s1, 4
      %s28 = int_to_ptr.hbm [resolvable:$true] %s27
      %s29 = sshll.u32 [#allocation3], 4
      %s30 = int_to_ptr.vmem [resolvable:$true] %s29
      %32 = dma.hbm_to_vmem [thread:$0]  %s28, 128, %s30, [#allocation4]
    $region9: #{tpu_custom_call.1} parent=1 // pred_fallthru
      _
    // Predicated region
    $region10: #{tpu_custom_call.1} parent=1 // pred_check
      _
    $region11: #{tpu_custom_call.1} parent=1 // pred_check_branch
      %34 = sbr.rel (0) target = $region13
    $region12: #{tpu_custom_call.1} parent=1 // pred_region
      %36 = vsyncadd [#allocation6], 0
      %s38 = sshll.u32 %s2, 4
      %s39 = int_to_ptr.hbm [resolvable:$true] %s38
      %s40 = sshll.u32 [#allocation5], 4
      %s41 = int_to_ptr.vmem [resolvable:$true] %s40
      %43 = dma.hbm_to_vmem [thread:$0]  %s39, 128, %s41, [#allocation6]
    $region13: #{tpu_custom_call.1} parent=1 // pred_fallthru
      _
    // Predicated region
    $region14: #{tpu_custom_call.1} parent=1 // pred_check
      _
    $region15: #{tpu_custom_call.1} parent=1 // pred_check_branch
      %45 = sbr.rel (0) target = $region17
    $region16: #{tpu_custom_call.1} parent=1 // pred_region
      %47 = vsyncadd [#allocation6], 0
      %s49 = sshll.u32 %s3, 4
      %s50 = int_to_ptr.hbm [resolvable:$true] %s49
      %s51 = sshll.u32 [#allocation7], 4
      %s52 = int_to_ptr.vmem [resolvable:$true] %s51
      %54 = dma.hbm_to_vmem [thread:$0]  %s50, 128, %s52, [#allocation6]
    $region17: #{tpu_custom_call.1} parent=1 // pred_fallthru
      _
    // Predicated region
    $region18: #{tpu_custom_call.1} parent=1 // pred_check
      _
    $region19: #{tpu_custom_call.1} parent=1 // pred_check_branch
      %56 = sbr.rel (0) target = $region21
    $region20: #{tpu_custom_call.1} parent=1 // pred_region
      %58 = vsyncadd [#allocation9], 0
      %s60 = sshll.u32 %s4, 4
      %s61 = int_to_ptr.hbm [resolvable:$true] %s60
      %s62 = sshll.u32 [#allocation8], 4
      %s63 = int_to_ptr.vmem [resolvable:$true] %s62
      %65 = dma.hbm_to_vmem [thread:$0]  %s61, 128, %s63, [#allocation9]
    $region21: #{tpu_custom_call.1} parent=1 // pred_fallthru
      _
    // Predicated region
    $region22: #{tpu_custom_call.1} parent=1 // pred_check
      _
    $region23: #{tpu_custom_call.1} parent=1 // pred_check_branch
      %67 = sbr.rel (0) target = $region25
    $region24: #{tpu_custom_call.1} parent=1 // pred_region
      %69 = vsyncadd [#allocation9], 0
      %s71 = sshll.u32 %s5, 4
      %s72 = int_to_ptr.hbm [resolvable:$true] %s71
      %s73 = sshll.u32 [#allocation10], 4
      %s74 = int_to_ptr.vmem [resolvable:$true] %s73
      %76 = dma.hbm_to_vmem [thread:$0]  %s72, 128, %s74, [#allocation9]
    $region25: #{tpu_custom_call.1} parent=1 // pred_fallthru
      _
    // Predicated region
    $region26: #{tpu_custom_call.1} parent=1 // pred_check
      _
    $region27: #{tpu_custom_call.1} parent=1 // pred_check_branch
      %78 = sbr.rel (0) target = $region29
    $region28: #{tpu_custom_call.1} parent=1 // pred_region
      %80 = vsyncadd [#allocation12], 0
      %s82 = sshll.u32 %s6, 4
      %s83 = int_to_ptr.hbm [resolvable:$true] %s82
      %s84 = sshll.u32 [#allocation11], 4
      %s85 = int_to_ptr.vmem [resolvable:$true] %s84
      %87 = dma.hbm_to_vmem [thread:$0]  %s83, 128, %s85, [#allocation12]
    $region29: #{tpu_custom_call.1} parent=1 // pred_fallthru
      _
    // Predicated region
    $region30: #{tpu_custom_call.1} parent=1 // pred_check
      _
    $region31: #{tpu_custom_call.1} parent=1 // pred_check_branch
      %89 = sbr.rel (0) target = $region33
    $region32: #{tpu_custom_call.1} parent=1 // pred_region
      %91 = dma.done [#allocation4], 128
    $region33: #{tpu_custom_call.1} parent=1 // pred_fallthru
      _
    // Predicated region
    $region34: #{tpu_custom_call.1} parent=1 // pred_check
      _
    $region35: #{tpu_custom_call.1} parent=1 // pred_check_branch
      %93 = sbr.rel (0) target = $region37
    $region36: #{tpu_custom_call.1} parent=1 // pred_region
      %95 = dma.done [#allocation6], 128
    $region37: #{tpu_custom_call.1} parent=1 // pred_fallthru
      _
    // Predicated region
    $region38: #{tpu_custom_call.1} parent=1 // pred_check
      _
    $region39: #{tpu_custom_call.1} parent=1 // pred_check_branch
      %97 = sbr.rel (0) target = $region41
    $region40: #{tpu_custom_call.1} parent=1 // pred_region
      %99 = dma.done [#allocation6], 128
    $region41: #{tpu_custom_call.1} parent=1 // pred_fallthru
      _
    // Predicated region
    $region42: #{tpu_custom_call.1} parent=1 // pred_check
      _
    $region43: #{tpu_custom_call.1} parent=1 // pred_check_branch
      %101 = sbr.rel (0) target = $region45
    $region44: #{tpu_custom_call.1} parent=1 // pred_region
      %103 = dma.done [#allocation9], 128
    $region45: #{tpu_custom_call.1} parent=1 // pred_fallthru
      _
    // Predicated region
    $region46: #{tpu_custom_call.1} parent=1 // pred_check
      _
    $region47: #{tpu_custom_call.1} parent=1 // pred_check_branch
      %105 = sbr.rel (0) target = $region49
    $region48: #{tpu_custom_call.1} parent=1 // pred_region
      %107 = dma.done [#allocation9], 128
    $region49: #{tpu_custom_call.1} parent=1 // pred_fallthru
      _
    // Predicated region
    $region50: #{tpu_custom_call.1} parent=1 // pred_check
      _
    $region51: #{tpu_custom_call.1} parent=1 // pred_check_branch
      %109 = sbr.rel (0) target = $region53
    $region52: #{tpu_custom_call.1} parent=1 // pred_region
      %111 = dma.done [#allocation12], 128
    $region53: #{tpu_custom_call.1} parent=1 // pred_fallthru
      _
    %s112 = sld [smem:[#allocation2]]
    %v113 = vld [vmem:[#allocation3] sm:$0xff]
    %v114 = vld [vmem:[#allocation5] sm:$0xff]
    %v115 = vld [vmem:[#allocation7] sm:$0xff]
    %v116 = vld [vmem:[#allocation8] sm:$0xff]
    %v117 = vld [vmem:[#allocation10] sm:$0xff]
    %v118 = vld [vmem:[#allocation11] sm:$0xff]
    %v119 = vmul.f32 %v113, %v113
    %vm120 = vcmask 261120
    %v121 = vsel %vm120, %v119, 0.0
    %122 = vadd.xlane.f32.xlu0 %v121
    %v123 = vpop.xlane.xlu0 %122
    %v124 = vmul.f32 %v114, %v114
    %v125 = vsel %vm120, %v124, 0.0
    %126 = vadd.xlane.f32.xlu0 %v125
    %v127 = vpop.xlane.xlu0 %126
    %v128 = vmul.f32 %v115, %v115
    %v129 = vsel %vm120, %v128, 0.0
    %130 = vadd.xlane.f32.xlu0 %v129
    %v131 = vpop.xlane.xlu0 %130
    %v132 = vmul.f32 %v116, %v116
    %v133 = vsel %vm120, %v132, 0.0
    %134 = vadd.xlane.f32.xlu0 %v133
    %v135 = vpop.xlane.xlu0 %134
    %v136 = vmul.f32 %v117, %v117
    %v137 = vsel %vm120, %v136, 0.0
    %138 = vadd.xlane.f32.xlu0 %v137
    %v139 = vpop.xlane.xlu0 %138
    %v140 = vmul.f32 %v118, %v118
    %v141 = vsel %vm120, %v140, 0.0
    %142 = vadd.xlane.f32.xlu0 %v141
    %v143 = vpop.xlane.xlu0 %142
    %v144 = vmul.f32 %v113, %v114
    %v145 = vsel %vm120, %v144, 0.0
    %146 = vadd.xlane.f32.xlu0 %v145
    %v147 = vpop.xlane.xlu0 %146
    %v148 = vmul.f32 %v113, %v115
    %v149 = vsel %vm120, %v148, 0.0
    %150 = vadd.xlane.f32.xlu0 %v149
    %v151 = vpop.xlane.xlu0 %150
    %v152 = vmul.f32 %v113, %v116
    %v153 = vsel %vm120, %v152, 0.0
    %154 = vadd.xlane.f32.xlu0 %v153
    %v155 = vpop.xlane.xlu0 %154
    %v156 = vmul.f32 %v114, %v117
    %v157 = vsel %vm120, %v156, 0.0
    %158 = vadd.xlane.f32.xlu0 %v157
    %v159 = vpop.xlane.xlu0 %158
    %v160 = vmul.f32 %v114, %v118
    %v161 = vsel %vm120, %v160, 0.0
    %162 = vadd.xlane.f32.xlu0 %v161
    %v163 = vpop.xlane.xlu0 %162
    %v164 = vmul.f32 %v123, %v127
    %v165 = vmax.f32 %v164, 1e-16
    %v166 = vrsqrt.pop %v165
    %v167 = vmul.f32 %v166, %v165
    %v168 = vmul.f32 %v167, %v166
    %v169 = vmul.f32 0.5, %v168
    %v170 = vsub.f32 1.5, %v169
    %v171 = vmul.f32 %v166, %v170
    %vm172 = vweird.f32 %v165
    %vm173 = vweird.f32 %v166
    %vm174 = vmor %vm172, %vm173
    %v175 = vsel %vm174, %v166, %v171
    %v176 = vmul.f32 %v147, %v175
    %v177 = vsub.f32 1.0, %v176
    %v178 = vrsqrt.pop %v164
    %v179 = vmul.f32 %v178, %v164
    %v180 = vmul.f32 %v179, %v178
    %v181 = vmul.f32 0.5, %v180
    %v182 = vsub.f32 1.5, %v181
    %v183 = vmul.f32 %v178, %v182
    %vm184 = vweird.f32 %v164
    %vm185 = vweird.f32 %v178
    %vm186 = vmor %vm184, %vm185
    %v187 = vsel %vm186, %v178, %v183
    %v188 = vmul.f32 %v147, %v187
    %v189 = vmul.f32 %v123, %v131
    %v190 = vmax.f32 %v189, 1e-16
    %v191 = vrsqrt.pop %v190
    %v192 = vmul.f32 %v191, %v190
    %v193 = vmul.f32 %v192, %v191
    %v194 = vmul.f32 0.5, %v193
    %v195 = vsub.f32 1.5, %v194
    %v196 = vmul.f32 %v191, %v195
    %vm197 = vweird.f32 %v190
    %vm198 = vweird.f32 %v191
    %vm199 = vmor %vm197, %vm198
    %v200 = vsel %vm199, %v191, %v196
    %v201 = vmul.f32 %v151, %v200
    %v202 = vsub.f32 1.0, %v201
    %v203 = vmul.f32 %v123, %v135
    %v204 = vmax.f32 %v203, 1e-16
    %v205 = vrsqrt.pop %v204
    %v206 = vmul.f32 %v205, %v204
    %v207 = vmul.f32 %v206, %v205
    %v208 = vmul.f32 0.5, %v207
    %v209 = vsub.f32 1.5, %v208
    %v210 = vmul.f32 %v205, %v209
    %vm211 = vweird.f32 %v204
    %vm212 = vweird.f32 %v205
    %vm213 = vmor %vm211, %vm212
    %v214 = vsel %vm213, %v205, %v210
    %v215 = vmul.f32 %v155, %v214
    %v216 = vsub.f32 1.0, %v215
    %v217 = vmin.f32 %v202, %v216
    %v218 = vmul.f32 %v127, %v139
    %v219 = vmax.f32 %v218, 1e-16
    %v220 = vrsqrt.pop %v219
    %v221 = vmul.f32 %v220, %v219
    %v222 = vmul.f32 %v221, %v220
    %v223 = vmul.f32 0.5, %v222
    %v224 = vsub.f32 1.5, %v223
    %v225 = vmul.f32 %v220, %v224
    %vm226 = vweird.f32 %v219
    %vm227 = vweird.f32 %v220
    %vm228 = vmor %vm226, %vm227
    %v229 = vsel %vm228, %v220, %v225
    %v230 = vmul.f32 %v159, %v229
    %v231 = vsub.f32 1.0, %v230
    %v232 = vmul.f32 %v127, %v143
    %v233 = vmax.f32 %v232, 1e-16
    %v234 = vrsqrt.pop %v233
    %v235 = vmul.f32 %v234, %v233
    %v236 = vmul.f32 %v235, %v234
    %v237 = vmul.f32 0.5, %v236
    %v238 = vsub.f32 1.5, %v237
    %v239 = vmul.f32 %v234, %v238
    %vm240 = vweird.f32 %v233
    %vm241 = vweird.f32 %v234
    %vm242 = vmor %vm240, %vm241
    %v243 = vsel %vm242, %v234, %v239
    %v244 = vmul.f32 %v163, %v243
    %v245 = vsub.f32 1.0, %v244
    %v246 = vmin.f32 %v231, %v245
    %vm247 = vcmask 7168
    %248 = vst.msk [vmem:[%s7] sm:$0xff] %vm247, %v188
    %v249 = vsub.f32 %v177, %v217
    %v250 = vstv %s112
    %v251 = vadd.f32 %v249, %v250
    %v252 = vmax.f32 %v251, 0.0
    %253 = vst.msk [vmem:[%s8] sm:$0xff] %vm247, %v252
    %v254 = vsub.f32 %v177, %v246
    %v255 = vadd.f32 %v254, %v250
    %v256 = vmax.f32 %v255, 0.0
    %257 = vst.msk [vmem:[%s9] sm:$0xff] %vm247, %v256
    // Predicated region
    $region54: #{tpu_custom_call.1} parent=1 // pred_check
      _
    $region55: #{tpu_custom_call.1} parent=1 // pred_check_branch
      %259 = sbr.rel (0) target = $region57
    $region56: #{tpu_custom_call.1} parent=1 // pred_region
      _
    $region57: #{tpu_custom_call.1} parent=1 // pred_fallthru
      _
    // Predicated region
    $region58: #{tpu_custom_call.1} parent=1 // pred_check
      _
    $region59: #{tpu_custom_call.1} parent=1 // pred_check_branch
      %261 = sbr.rel (0) target = $region61
    $region60: #{tpu_custom_call.1} parent=1 // pred_region
      _
    $region61: #{tpu_custom_call.1} parent=1 // pred_fallthru
      _
    // Predicated region
    $region62: #{tpu_custom_call.1} parent=1 // pred_check
      _
    $region63: #{tpu_custom_call.1} parent=1 // pred_check_branch
      %263 = sbr.rel (0) target = $region65
    $region64: #{tpu_custom_call.1} parent=1 // pred_region
      _
    $region65: #{tpu_custom_call.1} parent=1 // pred_fallthru
      _
    // Predicated region
    $region66: #{tpu_custom_call.1} parent=1 // pred_check
      _
    $region67: #{tpu_custom_call.1} parent=1 // pred_check_branch
      %265 = sbr.rel (0) target = $region69
    $region68: #{tpu_custom_call.1} parent=1 // pred_region
      _
    $region69: #{tpu_custom_call.1} parent=1 // pred_fallthru
      _
    // Predicated region
    $region70: #{tpu_custom_call.1} parent=1 // pred_check
      _
    $region71: #{tpu_custom_call.1} parent=1 // pred_check_branch
      %267 = sbr.rel (0) target = $region73
    $region72: #{tpu_custom_call.1} parent=1 // pred_region
      _
    $region73: #{tpu_custom_call.1} parent=1 // pred_fallthru
      _
    // Predicated region
    $region74: #{tpu_custom_call.1} parent=1 // pred_check
      _
    $region75: #{tpu_custom_call.1} parent=1 // pred_check_branch
      %269 = sbr.rel (0) target = $region77
    $region76: #{tpu_custom_call.1} parent=1 // pred_region
      _
    $region77: #{tpu_custom_call.1} parent=1 // pred_fallthru
      _
    %270 = vsyncpa [#allocation4], 1
    %271 = vsyncpa [#allocation6], 1
    %272 = vsyncpa [#allocation9], 1
    %273 = vsyncpa [#allocation12], 1

</llo_original>
